<compile_context>
chip_gen: v5e
topology: v5e:2x2
jax: 0.10.0
libtpu: 0.0.40
codegen_flags: <defaults>
</compile_context>

<pallas_src>
import functools

import jax
import jax.numpy as jnp
from jax.experimental import pallas as pl
from jax.experimental.pallas import tpu as pltpu


def _round_up(n: int, m: int) -> int:
    return ((n + m - 1) // m) * m


def _critic_kernel(s_ref, a_ref, w1s_ref, w1a_ref, b1_ref, w2_ref, b2_ref,
                   w3t_ref, b3_ref, o_ref):
    # Layer 1: the obs/act concat is fused as a row-split of W1, so no
    # (tile, d_in) tensor is ever materialized.  Dots run on the MXU in the
    # storage dtype (bf16) with f32 accumulation; bias + ReLU in f32 (VPU).
    h1 = (jnp.dot(s_ref[...], w1s_ref[...], preferred_element_type=jnp.float32)
          + jnp.dot(a_ref[...], w1a_ref[...], preferred_element_type=jnp.float32)
          + b1_ref[...])
    h1 = jnp.maximum(h1, 0.0)

    # Layer 2.
    h2 = jnp.dot(h1.astype(w2_ref.dtype), w2_ref[...],
                 preferred_element_type=jnp.float32) + b2_ref[...]
    h2 = jnp.maximum(h2, 0.0)

    # Layer 3 (out_features == 1): an N=1 matmul fills 1 of 256 MXU columns,
    # so do it as a VPU multiply + lane reduction (XLU) instead - both units
    # have free slots next to the two real matmuls.
    out = jnp.sum(h2 * w3t_ref[...], axis=-1, keepdims=True) + b3_ref[...]
    o_ref[...] = out.astype(o_ref.dtype)


def critic_forward(s, a, params, *, batch_tile=512, dot_dtype=jnp.bfloat16):
    """Critic forward pass.

    s: sequence/stack of per-agent observations, each (B, obs_i)
    a: sequence/stack of per-agent actions,      each (B, act_i)
    params: (w1, b1, w2, b2, w3, b3), weights stored (in_features, out_features).
    """
    # Per-agent concat is cheap glue; the big obs/act concat is fused into the
    # kernel by splitting W1 row-wise.
    s_cat = jnp.concatenate(list(s), axis=1)
    a_cat = jnp.concatenate(list(a), axis=1)

    w1, b1, w2, b2, w3, b3 = params
    B, d_s = s_cat.shape
    d_a = a_cat.shape[1]
    d_in = d_s + d_a
    H = w1.shape[1]
    d_out = w3.shape[1]

    # Matmul operands in MXU-native dtype; everything on the VPU stays f32.
    w1s = w1[:d_s].astype(dot_dtype)
    w1a = w1[d_s:].astype(dot_dtype)
    w2c = w2.astype(dot_dtype)
    w3t = w3.T.astype(jnp.float32)                 # (1, H) row for mul+reduce
    b1r = b1.reshape(1, H).astype(jnp.float32)
    b2r = b2.reshape(1, H).astype(jnp.float32)
    b3r = b3.reshape(1, d_out).astype(jnp.float32)

    s_in = s_cat.astype(dot_dtype)
    a_in = a_cat.astype(dot_dtype)

    # MXU-aligned batch tile (512 = 2x256, the v6e/v7x MXU tile; also a 128
    # multiple for v5e).  Shrink for tiny batches so the demo doesn't compute
    # a mostly-padded tile; keep a multiple of 16 for bf16 sublane packing.
    # For v7x, prefer B large enough that grid >= 2 so both TensorCores work.
    tile = min(batch_tile, _round_up(B, 16))
    tile = _round_up(tile, 16)
    padded_B = _round_up(B, tile)
    if padded_B != B:
        pad = padded_B - B
        s_in = jnp.pad(s_in, ((0, pad), (0, 0)))
        a_in = jnp.pad(a_in, ((0, pad), (0, 0)))

    grid = (padded_B // tile,)

    itemsize = jnp.dtype(dot_dtype).itemsize
    weight_bytes = ((w1s.size + w1a.size + w2c.size) * itemsize
                    + (w3t.size + b1r.size + b2r.size + b3r.size) * 4)
    cost = pl.CostEstimate(
        flops=2 * padded_B * (d_in * H + H * H + H * d_out),
        transcendentals=0,
        bytes_accessed=padded_B * d_in * itemsize + weight_bytes
                       + padded_B * d_out * 4,
    )

    out = pl.pallas_call(
        _critic_kernel,
        out_shape=jax.ShapeDtypeStruct((padded_B, d_out), jnp.float32),
        grid_spec=pltpu.PrefetchScalarGridSpec(
            num_scalar_prefetch=0,
            grid=grid,
            in_specs=[
                pl.BlockSpec((tile, d_s), lambda i: (i, 0)),    # s tile
                pl.BlockSpec((tile, d_a), lambda i: (i, 0)),    # a tile
                pl.BlockSpec((d_s, H), lambda i: (0, 0)),       # W1 rows for s
                pl.BlockSpec((d_a, H), lambda i: (0, 0)),       # W1 rows for a
                pl.BlockSpec((1, H), lambda i: (0, 0)),         # b1
                pl.BlockSpec((H, H), lambda i: (0, 0)),         # W2
                pl.BlockSpec((1, H), lambda i: (0, 0)),         # b2
                pl.BlockSpec((1, H), lambda i: (0, 0)),         # W3^T row
                pl.BlockSpec((1, d_out), lambda i: (0, 0)),     # b3
            ],
            # TODO(synk): the (tile, 1) output lowers to masked lane stores
            # (vst.msk); a lane-dense slab layout would remove them, but with a
            # large batch_tile this is second-order, so kept simple.
            out_specs=pl.BlockSpec((tile, d_out), lambda i: (i, 0)),
        ),
        compiler_params=pltpu.CompilerParams(
            dimension_semantics=("parallel",),
        ),
        cost_estimate=cost,
    )(s_in, a_in, w1s, w1a, b1r, w2c, b2r, w3t, b3r)
    return out[:B]


def init_params(key, input_size, hidden_size=128, output_size=1):
    """Deterministic synthetic parameters (shapes match the nn.Linear layers)."""
    k1, k2, k3, k4, k5, k6 = jax.random.split(key, 6)
    scale1 = 1.0 / jnp.sqrt(input_size)
    scale2 = 1.0 / jnp.sqrt(hidden_size)
    w1 = jax.random.uniform(k1, (input_size, hidden_size), jnp.float32, -scale1, scale1)
    b1 = jax.random.uniform(k2, (1, hidden_size), jnp.float32, -scale1, scale1)
    w2 = jax.random.uniform(k3, (hidden_size, hidden_size), jnp.float32, -scale2, scale2)
    b2 = jax.random.uniform(k4, (1, hidden_size), jnp.float32, -scale2, scale2)
    w3 = jax.random.uniform(k5, (hidden_size, output_size), jnp.float32, -scale2, scale2)
    b3 = jax.random.uniform(k6, (1, output_size), jnp.float32, -scale2, scale2)
    return (w1, b1, w2, b2, w3, b3)


def _reference(s, a, params, dot_dtype=jnp.bfloat16):
    """Matched-precision reference (same bf16 casts, f32 accumulation)."""
    w1, b1, w2, b2, w3, b3 = params
    x = jnp.concatenate([jnp.concatenate(list(s), axis=1),
                         jnp.concatenate(list(a), axis=1)], axis=1)
    h = jnp.dot(x.astype(dot_dtype), w1.astype(dot_dtype),
                preferred_element_type=jnp.float32) + b1.reshape(1, -1)
    h = jnp.maximum(h, 0.0)
    h = jnp.dot(h.astype(dot_dtype), w2.astype(dot_dtype),
                preferred_element_type=jnp.float32) + b2.reshape(1, -1)
    h = jnp.maximum(h, 0.0)
    return h @ w3 + b3.reshape(1, -1)


if __name__ == "__main__":
    key = jax.random.PRNGKey(0)
    k_s, k_a, k_p = jax.random.split(key, 3)

    n_agents = 2
    batch = 8
    obs_dim = 8      # per-agent observation dim
    act_dim = 4      # per-agent action dim
    observation_space = n_agents * obs_dim          # 16
    action_space = n_agents * act_dim               # 8
    input_size = observation_space + action_space   # 24

    s = jax.random.normal(k_s, (n_agents, batch, obs_dim), jnp.float32)
    a = jax.random.normal(k_a, (n_agents, batch, act_dim), jnp.float32)
    params = init_params(k_p, input_size)

    fwd = jax.jit(functools.partial(critic_forward, batch_tile=512))
    out = fwd(s, a, params)
    out = jax.block_until_ready(out)

    ref = _reference(s, a, params)
    assert out.shape == (batch, 1), out.shape
    assert jnp.allclose(out, ref, atol=1e-3, rtol=1e-3), "mismatch vs reference"

    print("KERNEL_OK")
</pallas_src>

<mosaic_0001>
module attributes {stable_mosaic.version = 11 : i64} {
  func.func @_critic_kernel(%arg0: i32, %arg1: memref<16x16xbf16, #tpu.memory_space<vmem>>, %arg2: memref<16x8xbf16, #tpu.memory_space<vmem>>, %arg3: memref<16x128xbf16, #tpu.memory_space<vmem>>, %arg4: memref<8x128xbf16, #tpu.memory_space<vmem>>, %arg5: memref<1x128xf32, #tpu.memory_space<vmem>>, %arg6: memref<128x128xbf16, #tpu.memory_space<vmem>>, %arg7: memref<1x128xf32, #tpu.memory_space<vmem>>, %arg8: memref<1x128xf32, #tpu.memory_space<vmem>>, %arg9: memref<1x1xf32, #tpu.memory_space<vmem>>, %arg10: memref<16x1xf32, #tpu.memory_space<vmem>>) attributes {dimension_semantics = [#tpu.dimension_semantics<parallel>], iteration_bounds = array<i64: 1>, scalar_prefetch = 0 : i64, scratch_operands = 0 : i64, tpu.core_type = #tpu.core_type<tc>, window_params = [{transform_indices = @transform_0, window_bounds = array<i64: 16, 16>}, {transform_indices = @transform_1, window_bounds = array<i64: 16, 8>}, {pipeline_mode = #tpu.pipeline_mode<synchronous>, transform_indices = @transform_2, window_bounds = array<i64: 16, 128>}, {pipeline_mode = #tpu.pipeline_mode<synchronous>, transform_indices = @transform_3, window_bounds = array<i64: 8, 128>}, {pipeline_mode = #tpu.pipeline_mode<synchronous>, transform_indices = @transform_4, window_bounds = array<i64: 1, 128>}, {pipeline_mode = #tpu.pipeline_mode<synchronous>, transform_indices = @transform_5, window_bounds = array<i64: 128, 128>}, {pipeline_mode = #tpu.pipeline_mode<synchronous>, transform_indices = @transform_6, window_bounds = array<i64: 1, 128>}, {pipeline_mode = #tpu.pipeline_mode<synchronous>, transform_indices = @transform_7, window_bounds = array<i64: 1, 128>}, {pipeline_mode = #tpu.pipeline_mode<synchronous>, transform_indices = @transform_8, window_bounds = array<i64: 1, 1>}, {transform_indices = @transform_9, window_bounds = array<i64: 16, 1>}]} {
    %c0 = arith.constant 0 : index
    %c0_0 = arith.constant 0 : index
    %0 = vector.load %arg1[%c0, %c0_0] : memref<16x16xbf16, #tpu.memory_space<vmem>>, vector<16x16xbf16>
    %c0_1 = arith.constant 0 : index
    %c0_2 = arith.constant 0 : index
    %1 = vector.load %arg3[%c0_1, %c0_2] : memref<16x128xbf16, #tpu.memory_space<vmem>>, vector<16x128xbf16>
    %cst = arith.constant dense<0.000000e+00> : vector<16x128xf32>
    %2 = tpu.matmul %0, %1, %cst {dimension_numbers = #tpu.dot_dimension_numbers<[1], [0], [0], [1], [0, 0, 1, 1], [], []>} : vector<16x16xbf16>, vector<16x128xbf16>, vector<16x128xf32> -> vector<16x128xf32>
    %c0_3 = arith.constant 0 : index
    %c0_4 = arith.constant 0 : index
    %3 = vector.load %arg2[%c0_3, %c0_4] : memref<16x8xbf16, #tpu.memory_space<vmem>>, vector<16x8xbf16>
    %c0_5 = arith.constant 0 : index
    %c0_6 = arith.constant 0 : index
    %4 = vector.load %arg4[%c0_5, %c0_6] : memref<8x128xbf16, #tpu.memory_space<vmem>>, vector<8x128xbf16>
    %cst_7 = arith.constant dense<0.000000e+00> : vector<16x128xf32>
    %5 = tpu.matmul %3, %4, %cst_7 {dimension_numbers = #tpu.dot_dimension_numbers<[1], [0], [0], [1], [0, 0, 1, 1], [], []>} : vector<16x8xbf16>, vector<8x128xbf16>, vector<16x128xf32> -> vector<16x128xf32>
    %6 = arith.addf %2, %5 : vector<16x128xf32>
    %c0_8 = arith.constant 0 : index
    %c0_9 = arith.constant 0 : index
    %7 = vector.load %arg5[%c0_8, %c0_9] : memref<1x128xf32, #tpu.memory_space<vmem>>, vector<1x128xf32>
    %8 = vector.broadcast %7 : vector<1x128xf32> to vector<16x128xf32>
    %9 = arith.addf %6, %8 : vector<16x128xf32>
    %cst_10 = arith.constant 0.000000e+00 : f32
    %10 = vector.broadcast %cst_10 : f32 to vector<16x128xf32>
    %11 = arith.maximumf %9, %10 : vector<16x128xf32>
    %12 = arith.truncf %11 : vector<16x128xf32> to vector<16x128xbf16>
    %c0_11 = arith.constant 0 : index
    %c0_12 = arith.constant 0 : index
    %13 = vector.load %arg6[%c0_11, %c0_12] : memref<128x128xbf16, #tpu.memory_space<vmem>>, vector<128x128xbf16>
    %cst_13 = arith.constant dense<0.000000e+00> : vector<16x128xf32>
    %14 = tpu.matmul %12, %13, %cst_13 {dimension_numbers = #tpu.dot_dimension_numbers<[1], [0], [0], [1], [0, 0, 1, 1], [], []>} : vector<16x128xbf16>, vector<128x128xbf16>, vector<16x128xf32> -> vector<16x128xf32>
    %c0_14 = arith.constant 0 : index
    %c0_15 = arith.constant 0 : index
    %15 = vector.load %arg7[%c0_14, %c0_15] : memref<1x128xf32, #tpu.memory_space<vmem>>, vector<1x128xf32>
    %16 = vector.broadcast %15 : vector<1x128xf32> to vector<16x128xf32>
    %17 = arith.addf %14, %16 : vector<16x128xf32>
    %cst_16 = arith.constant 0.000000e+00 : f32
    %18 = vector.broadcast %cst_16 : f32 to vector<16x128xf32>
    %19 = arith.maximumf %17, %18 : vector<16x128xf32>
    %c0_17 = arith.constant 0 : index
    %c0_18 = arith.constant 0 : index
    %20 = vector.load %arg8[%c0_17, %c0_18] : memref<1x128xf32, #tpu.memory_space<vmem>>, vector<1x128xf32>
    %21 = vector.broadcast %20 : vector<1x128xf32> to vector<16x128xf32>
    %22 = arith.mulf %19, %21 : vector<16x128xf32>
    %cst_19 = arith.constant dense<0.000000e+00> : vector<16xf32>
    %23 = vector.multi_reduction <add>, %22, %cst_19 [1] : vector<16x128xf32> to vector<16xf32>
    %24 = vector.shape_cast %23 : vector<16xf32> to vector<16x1xf32>
    %c0_20 = arith.constant 0 : index
    %c0_21 = arith.constant 0 : index
    %25 = vector.load %arg9[%c0_20, %c0_21] : memref<1x1xf32, #tpu.memory_space<vmem>>, vector<1x1xf32>
    %26 = vector.broadcast %25 : vector<1x1xf32> to vector<16x1xf32>
    %27 = arith.addf %24, %26 : vector<16x1xf32>
    %c0_22 = arith.constant 0 : index
    %c0_23 = arith.constant 0 : index
    %28 = vector.load %arg10[%c0_22, %c0_23] : memref<16x1xf32, #tpu.memory_space<vmem>>, vector<16x1xf32>
    tpu.vector_store %arg10[%c0_22, %c0_23], %27 {strides = array<i32>} : memref<16x1xf32, #tpu.memory_space<vmem>>, vector<16x1xf32>,
    return
  }
  func.func @transform_0(%arg0: i32) -> (i32, i32) {
    %c0_i32 = arith.constant 0 : i32
    %c0_i32_0 = arith.constant 0 : i32
    return %arg0, %c0_i32 : i32, i32
  }
  func.func @transform_1(%arg0: i32) -> (i32, i32) {
    %c0_i32 = arith.constant 0 : i32
    %c0_i32_0 = arith.constant 0 : i32
    return %arg0, %c0_i32 : i32, i32
  }
  func.func @transform_2(%arg0: i32) -> (i32, i32) {
    %c0_i32 = arith.constant 0 : i32
    %c0_i32_0 = arith.constant 0 : i32
    %c0_i32_1 = arith.constant 0 : i32
    return %c0_i32, %c0_i32_0 : i32, i32
  }
  func.func @transform_3(%arg0: i32) -> (i32, i32) {
    %c0_i32 = arith.constant 0 : i32
    %c0_i32_0 = arith.constant 0 : i32
    %c0_i32_1 = arith.constant 0 : i32
    return %c0_i32, %c0_i32_0 : i32, i32
  }
  func.func @transform_4(%arg0: i32) -> (i32, i32) {
    %c0_i32 = arith.constant 0 : i32
    %c0_i32_0 = arith.constant 0 : i32
    %c0_i32_1 = arith.constant 0 : i32
    return %c0_i32, %c0_i32_0 : i32, i32
  }
  func.func @transform_5(%arg0: i32) -> (i32, i32) {
    %c0_i32 = arith.constant 0 : i32
    %c0_i32_0 = arith.constant 0 : i32
    %c0_i32_1 = arith.constant 0 : i32
    return %c0_i32, %c0_i32_0 : i32, i32
  }
  func.func @transform_6(%arg0: i32) -> (i32, i32) {
    %c0_i32 = arith.constant 0 : i32
    %c0_i32_0 = arith.constant 0 : i32
    %c0_i32_1 = arith.constant 0 : i32
    return %c0_i32, %c0_i32_0 : i32, i32
  }
  func.func @transform_7(%arg0: i32) -> (i32, i32) {
    %c0_i32 = arith.constant 0 : i32
    %c0_i32_0 = arith.constant 0 : i32
    %c0_i32_1 = arith.constant 0 : i32
    return %c0_i32, %c0_i32_0 : i32, i32
  }
  func.func @transform_8(%arg0: i32) -> (i32, i32) {
    %c0_i32 = arith.constant 0 : i32
    %c0_i32_0 = arith.constant 0 : i32
    %c0_i32_1 = arith.constant 0 : i32
    return %c0_i32, %c0_i32_0 : i32, i32
  }
  func.func @transform_9(%arg0: i32) -> (i32, i32) {
    %c0_i32 = arith.constant 0 : i32
    %c0_i32_0 = arith.constant 0 : i32
    return %arg0, %c0_i32 : i32, i32
  }
}

</mosaic_0001>

<llo_original>
// kernel: critic_forward.1
$region0: #{critic_forward.1}
  #allocation0 [shape = 'u32[]', space=smem, size = 0x4, offset = 0x4, fixed_abs, tag = 'smem constant byte address 0x4 - core index']
  #allocation1 [shape = 'u32[72,128]{1,0:T(1,128)}', space=vmem, size = 0x9000, scoped, tag = 'internal scratch']
  #allocation2 [shape = 'f32[1,1]{1,0:T(1,128)S(1)}', space=vmem, size = 0x200, scoped, tag = 'scoped memory for critic_forward.1']
  %s0 = inlined_call_operand.vmem [shape: bf16[16,16], index: 0, kind: input, shape index: {}]
  %s1 = inlined_call_operand.vmem [shape: bf16[16,8], index: 1, kind: input, shape index: {}]
  %s2 = inlined_call_operand.vmem [shape: bf16[16,128], index: 2, kind: input, shape index: {}]
  %s3 = inlined_call_operand.vmem [shape: bf16[8,128], index: 3, kind: input, shape index: {}]
  %s4 = inlined_call_operand.vmem [shape: f32[1,128], index: 4, kind: input, shape index: {}]
  %s5 = inlined_call_operand.vmem [shape: bf16[128,128], index: 5, kind: input, shape index: {}]
  %s6 = inlined_call_operand.vmem [shape: f32[1,128], index: 6, kind: input, shape index: {}]
  %s7 = inlined_call_operand.vmem [shape: f32[1,128], index: 7, kind: input, shape index: {}]
  %s8 = inlined_call_operand.<no memory space> [shape: f32[1,1], index: 8, kind: input, shape index: {}]
  %s9 = inlined_call_operand.vmem [shape: f32[16,1], index: 9, kind: output, shape index: {}]
  %s10 = sld [smem:[#allocation0]]
  $region46: #{critic_forward.1} parent=0
    _
  %s12 = ssub.s32 1, %s10
  %s13 = scalar_select 0, %s12, %s10
  %v14 = vstv %s8
  %15 = vst [vmem:[#allocation2] sm:$0x1] %v14
  // Predicated region
  $region2: #{critic_forward.1} parent=0 // pred_check
    _
  $region3: #{critic_forward.1} parent=0 // pred_check_branch
    %17 = sbr.rel (0) target = $region5
  $region4: #{critic_forward.1} parent=0 // pred_region
    _
  $region5: #{critic_forward.1} parent=0 // pred_fallthru
    _
  // Predicated region
  $region6: #{critic_forward.1} parent=0 // pred_check
    _
  $region7: #{critic_forward.1} parent=0 // pred_check_branch
    %19 = sbr.rel (0) target = $region9
  $region8: #{critic_forward.1} parent=0 // pred_region
    _
  $region9: #{critic_forward.1} parent=0 // pred_fallthru
    _
  // Predicated region
  $region10: #{critic_forward.1} parent=0 // pred_check
    _
  $region11: #{critic_forward.1} parent=0 // pred_check_branch
    %21 = sbr.rel (0) target = $region13
  $region12: #{critic_forward.1} parent=0 // pred_region
    _
  $region13: #{critic_forward.1} parent=0 // pred_fallthru
    _
  // Predicated region
  $region14: #{critic_forward.1} parent=0 // pred_check
    _
  $region15: #{critic_forward.1} parent=0 // pred_check_branch
    %23 = sbr.rel (0) target = $region17
  $region16: #{critic_forward.1} parent=0 // pred_region
    _
  $region17: #{critic_forward.1} parent=0 // pred_fallthru
    _
  // Predicated region
  $region18: #{critic_forward.1} parent=0 // pred_check
    _
  $region19: #{critic_forward.1} parent=0 // pred_check_branch
    %25 = sbr.rel (0) target = $region21
  $region20: #{critic_forward.1} parent=0 // pred_region
    _
  $region21: #{critic_forward.1} parent=0 // pred_fallthru
    _
  // Predicated region
  $region22: #{critic_forward.1} parent=0 // pred_check
    _
  $region23: #{critic_forward.1} parent=0 // pred_check_branch
    %27 = sbr.rel (0) target = $region25
  $region24: #{critic_forward.1} parent=0 // pred_region
    _
  $region25: #{critic_forward.1} parent=0 // pred_fallthru
    _
  // Predicated region
  $region26: #{critic_forward.1} parent=0 // pred_check
    _
  $region27: #{critic_forward.1} parent=0 // pred_check_branch
    %29 = sbr.rel (0) target = $region29
  $region28: #{critic_forward.1} parent=0 // pred_region
    _
  $region29: #{critic_forward.1} parent=0 // pred_fallthru
    _
  // Predicated region
  $region30: #{critic_forward.1} parent=0 // pred_check
    _
  $region31: #{critic_forward.1} parent=0 // pred_check_branch
    %31 = sbr.rel (0) target = $region33
  $region32: #{critic_forward.1} parent=0 // pred_region
    _
  $region33: #{critic_forward.1} parent=0 // pred_fallthru
    _
  // Predicated region
  $region34: #{critic_forward.1} parent=0 // pred_check
    _
  $region35: #{critic_forward.1} parent=0 // pred_check_branch
    %33 = sbr.rel (0) target = $region37
  $region36: #{critic_forward.1} parent=0 // pred_region
    _
  $region37: #{critic_forward.1} parent=0 // pred_fallthru
    _
  %v35 = vld [vmem:[%s0] sm:$0xf]
  %v36 = vld [vmem:[%s0 + $0x4] sm:$0xf]
  %v37 = vld [vmem:[%s2] sm:$0xf]
  %v38 = vld [vmem:[%s2 + $0x4] sm:$0xf]
  %v39 = vld [vmem:[%s1] sm:$0xf]
  %v40 = vld [vmem:[%s1 + $0x4] sm:$0xf]
  %v41 = vld [vmem:[%s3] sm:$0xf]
  %v44 = vunpack.c.l.b16 %v39
  %v45 = vunpack.c.l.b16 %v40
  %v46 = vpack.c.b16 %v45, %v44
  %vm47 = vcmask 64512
  %v49 = vsel %vm47, %v46, 0
  %vm51 = vcmask 1043456
  %v53 = vsel %vm51, %v41, 0
  %55 = vmatpush.bf16.msra.mxu0 0
  %56 = vmatpush.bf16.msra.mxu0 0
  %57 = vmatpush.bf16.msra.mxu0 0
  %58 = vmatpush.bf16.msra.mxu0 0
  %59 = vmatpush.bf16.msra.mxu0 0
  %60 = vmatpush.bf16.msra.mxu0 0
  %61 = vmatpush.bf16.msra.mxu0 0
  %62 = vmatpush.bf16.msra.mxu0 %v53
  %63 = vmatmul.bf16.gmra.mxu0 %v49
  %v64 = vpop.f32.mrf.mxu0
  %v65 = vadd.f32 0.0, %v64
  %v66 = vpop.f32.mrf.mxu0
  %v67 = vadd.f32 0.0, %v66
  %68 = vdwg.mxu0
  %v71 = vunpack.c.l.b16 %v35
  %v72 = vunpack.c.l.b16 %v36
  %v73 = vpack.c.b16 %v72, %v71
  %v76 = vunpack.c.l.b16 %v37
  %v77 = vunpack.c.l.b16 %v38
  %v78 = vpack.c.b16 %v77, %v76
  %vm80 = vcmask 130048
  %v82 = vsel %vm80, %v73, 0
  %84 = vmatpush.bf16.msra.mxu0 0
  %85 = vmatpush.bf16.msra.mxu0 0
  %86 = vmatpush.bf16.msra.mxu0 0
  %87 = vmatpush.bf16.msra.mxu0 0
  %88 = vmatpush.bf16.msra.mxu0 0
  %89 = vmatpush.bf16.msra.mxu0 0
  %90 = vmatpush.bf16.msra.mxu0 0
  %91 = vmatpush.bf16.msra.mxu0 %v78
  %92 = vmatmul.bf16.gmra.mxu0 %v82
  %v93 = vpop.f32.mrf.mxu0
  %v94 = vadd.f32 %v65, %v93
  %v95 = vpop.f32.mrf.mxu0
  %v96 = vadd.f32 %v67, %v95
  %97 = vdwg.mxu0
  %v98 = vld [vmem:[%s4] sm:$0x1]
  %v100 = vperm.slane %v98, 0
  %v102 = vadd.f32 %v94, %v100
  %v103 = vadd.f32 %v96, %v100
  %v104 = vmax.f32 %v102, 0.0
  %v105 = vmax.f32 %v103, 0.0
  %v106 = vpack.c.bf16 %v105, %v104
  %v107 = vld [vmem:[%s5] sm:$0xf]
  %v108 = vld [vmem:[%s5 + $0x4] sm:$0xf]
  %v109 = vld [vmem:[%s5 + $0x8] sm:$0xf]
  %v110 = vld [vmem:[%s5 + $0xc] sm:$0xf]
  %v111 = vld [vmem:[%s5 + $0x10] sm:$0xf]
  %v112 = vld [vmem:[%s5 + $0x14] sm:$0xf]
  %v113 = vld [vmem:[%s5 + $0x18] sm:$0xf]
  %v114 = vld [vmem:[%s5 + $0x1c] sm:$0xf]
  %v115 = vld [vmem:[%s5 + $0x20] sm:$0xf]
  %v116 = vld [vmem:[%s5 + $0x24] sm:$0xf]
  %v117 = vld [vmem:[%s5 + $0x28] sm:$0xf]
  %v118 = vld [vmem:[%s5 + $0x2c] sm:$0xf]
  %v119 = vld [vmem:[%s5 + $0x30] sm:$0xf]
  %v120 = vld [vmem:[%s5 + $0x34] sm:$0xf]
  %v121 = vld [vmem:[%s5 + $0x38] sm:$0xf]
  %v122 = vld [vmem:[%s5 + $0x3c] sm:$0xf]
  %v123 = vld [vmem:[%s6] sm:$0x1]
  %v125 = vperm.slane %v123, 0
  %v143 = vunpack.c.l.b16 %v107
  %v144 = vunpack.c.l.b16 %v108
  %v145 = vunpack.c.l.b16 %v109
  %v146 = vunpack.c.l.b16 %v110
  %v147 = vunpack.c.l.b16 %v111
  %v148 = vunpack.c.l.b16 %v112
  %v149 = vunpack.c.l.b16 %v113
  %v150 = vunpack.c.l.b16 %v114
  %v151 = vunpack.c.l.b16 %v115
  %v152 = vunpack.c.l.b16 %v116
  %v153 = vunpack.c.l.b16 %v117
  %v154 = vunpack.c.l.b16 %v118
  %v155 = vunpack.c.l.b16 %v119
  %v156 = vunpack.c.l.b16 %v120
  %v157 = vunpack.c.l.b16 %v121
  %v158 = vunpack.c.l.b16 %v122
  %v159 = vpack.c.b16 %v144, %v143
  %v160 = vpack.c.b16 %v146, %v145
  %v161 = vpack.c.b16 %v148, %v147
  %v162 = vpack.c.b16 %v150, %v149
  %v163 = vpack.c.b16 %v152, %v151
  %v164 = vpack.c.b16 %v154, %v153
  %v165 = vpack.c.b16 %v156, %v155
  %v166 = vpack.c.b16 %v158, %v157
  %175 = vmatpush.bf16.msra.mxu0 %v166
  %176 = vmatpush.bf16.msra.mxu0 %v165
  %177 = vmatpush.bf16.msra.mxu0 %v164
  %178 = vmatpush.bf16.msra.mxu0 %v163
  %179 = vmatpush.bf16.msra.mxu0 %v162
  %180 = vmatpush.bf16.msra.mxu0 %v161
  %181 = vmatpush.bf16.msra.mxu0 %v160
  %182 = vmatpush.bf16.msra.mxu0 %v159
  %183 = vmatmul.bf16.gmra.mxu0 %v106
  %v184 = vpop.f32.mrf.mxu0
  %v185 = vadd.f32 %v125, %v184
  %v186 = vpop.f32.mrf.mxu0
  %v187 = vadd.f32 %v125, %v186
  %188 = vdwg.mxu0
  %v189 = vmax.f32 %v185, 0.0
  %v190 = vmax.f32 %v187, 0.0
  %v191 = vld [vmem:[%s7] sm:$0x1]
  %v193 = vperm.slane %v191, 0
  %v195 = vmul.f32 %v189, %v193
  %v196 = vmul.f32 %v190, %v193
  %197 = vadd.xlane.f32.xlu0 %v195
  %v198 = vpop.xlane.xlu0 %197
  %199 = vadd.xlane.f32.xlu0 %v196
  %v200 = vpop.xlane.xlu0 %199
  %v201 = vld [vmem:[#allocation2] sm:$0x1]
  %v203 = vperm.slane %v201, 0
  %v205 = vadd.f32 %v198, %v203
  %v206 = vadd.f32 %v200, %v203
  %vm207 = vcmask 7168
  %208 = vst.msk [vmem:[%s9] sm:$0xff] %vm207, %v205
  %209 = vst.msk [vmem:[%s9 + $0x8] sm:$0xff] %vm207, %v206
  // Predicated region
  $region38: #{critic_forward.1} parent=0 // pred_check
    _
  $region39: #{critic_forward.1} parent=0 // pred_check_branch
    %211 = sbr.rel (0) target = $region41
  $region40: #{critic_forward.1} parent=0 // pred_region
    _
  $region41: #{critic_forward.1} parent=0 // pred_fallthru
    _
  // Predicated region
  $region42: #{critic_forward.1} parent=0 // pred_check
    _
  $region43: #{critic_forward.1} parent=0 // pred_check_branch
    %213 = sbr.rel (0) target = $region45
  $region44: #{critic_forward.1} parent=0 // pred_region
    _
  $region45: #{critic_forward.1} parent=0 // pred_fallthru
    _

</llo_original>
